<compile_context>
chip_gen: v6e
topology: v6e:2x2x1
jax: 0.10.0
libtpu: 0.0.40
codegen_flags: <defaults>
</compile_context>

<pallas_src>
import jax
import jax.numpy as jnp
from jax.experimental import pallas as pl
from jax.experimental.pallas import tpu as pltpu

_LANES = 128


def _gather_cast_kernel(idx_ref, col_ref, out_ref):
    # idx_ref : SMEM (num_selected,) int32   (scalar prefetch; used by index_map only)
    # col_ref : VMEM (1, tile_rows, 128) src dtype -- one dense tile of one selected column
    # out_ref : VMEM (1, tile_rows, 128) dst dtype
    del idx_ref
    # float->int follows XLA convert (truncate toward zero), matching numpy .astype.
    out_ref[...] = col_ref[...].astype(out_ref.dtype)


def _per_block_target_bytes():
    """Per-buffer VMEM budget, sized per chip generation."""
    try:
        vmem = pltpu.get_tpu_info().vmem_capacity_bytes
    except Exception:  # not on TPU / info unavailable: assume the smallest (v7x = 64 MiB)
        vmem = 64 << 20
    # 128-MiB-VMEM chips (v5e/v6e): 4 MiB blocks.  64-MiB v7x: 2 MiB blocks.
    return (4 << 20) if vmem >= (96 << 20) else (2 << 20)


def _pick_tile_rows(rows_total, itemsize, num_selected):
    """Rows of 128 lanes per block; multiple of 8, or the full extent."""
    bytes_per_row = _LANES * itemsize
    tile_rows = max(8, (_per_block_target_bytes() // bytes_per_row) // 8 * 8)
    if tile_rows >= rows_total:
        # Split N into >= 2 tiles when the column axis alone cannot shard the
        # grid across v7x's two TensorCores (no effect on single-TC v5e/v6e).
        if num_selected == 1 and rows_total >= 16:
            return max(8, (rows_total // 2) // 8 * 8)
        return rows_total  # full extent is always a legal block extent
    return tile_rows


def cast_forward(table, selected_indices, out_dtype=jnp.float32):
    """table: (num_columns, N) raw columns; selected_indices: (num_selected,) int32.

    Returns the numpy.stack(columns, axis=-1) equivalent: (N, num_selected) in out_dtype.
    """
    num_columns, n = table.shape
    num_selected = int(selected_indices.shape[0])

    # Defense-in-depth only: indices are range-checked Python-side in CastPallas.cast.
    # The clamp guarantees a bad runtime index can never drive a silent OOB DMA.
    idx = jnp.clip(selected_indices.astype(jnp.int32), 0, num_columns - 1)

    # Pad N up to a lane multiple so the dense 3-D view is exact; the pad tail
    # is sliced off after the kernel.
    n_pad = ((n + _LANES - 1) // _LANES) * _LANES
    if n_pad != n:
        table = jnp.pad(table, ((0, 0), (0, n_pad - n)))
    rows_total = n_pad // _LANES

    itemsize = max(jnp.dtype(table.dtype).itemsize, jnp.dtype(out_dtype).itemsize)
    tile_rows = _pick_tile_rows(rows_total, itemsize, num_selected)
    n_tiles = pl.cdiv(rows_total, tile_rows)

    # Sublane-dense view: gathered axis leads (block size 1), block's last two
    # dims are (tile_rows, 128) -> full-width vld/vst, no sublane padding.
    table3 = table.reshape(num_columns, rows_total, _LANES)

    out = pl.pallas_call(
        _gather_cast_kernel,
        out_shape=jax.ShapeDtypeStruct((num_selected, rows_total, _LANES), out_dtype),
        grid_spec=pltpu.PrefetchScalarGridSpec(
            num_scalar_prefetch=1,
            grid=(num_selected, n_tiles),
            in_specs=[
                pl.BlockSpec((1, tile_rows, _LANES),
                             lambda j, t, idx_ref: (idx_ref[j], t, 0)),
            ],
            out_specs=pl.BlockSpec((1, tile_rows, _LANES),
                                   lambda j, t, idx_ref: (j, t, 0)),
        ),
        compiler_params=pltpu.CompilerParams(
            dimension_semantics=("parallel", "parallel"),
            vmem_limit_bytes=32 << 20),
    )(idx, table3)

    # numpy.stack(columns, axis=-1) layout: (N, num_selected).  The reshape is a
    # free row-major collapse of the dense output; the transpose is layout
    # plumbing done by XLA so kernel stores stay lane-dense.
    out2 = out.reshape(num_selected, n_pad)[:, :n]
    return jnp.transpose(out2, (1, 0))


class CastPallas:
    """JAX/Pallas analogue of mindalpha.cast.Cast (in-memory column_name_map)."""

    _ALLOWED_DTYPES = (jnp.int32, jnp.float32)  # TODO(synk): int64/float64 need jax x64 mode; skipped.

    def __init__(self, selected_columns, column_name_map, dtype=jnp.float32):
        if not isinstance(selected_columns, (list, tuple)):
            raise TypeError(f'list or tuple of strings expected; {selected_columns!r} is invalid')
        if not all(isinstance(item, str) for item in selected_columns):
            raise TypeError(f'list or tuple of strings expected; {selected_columns!r} is invalid')
        if not selected_columns:
            raise ValueError('selected_columns must not be empty')
        if dtype not in self._ALLOWED_DTYPES:
            raise TypeError(f'dtype must be one of: int32, float32; {dtype!r} is invalid')
        missing = tuple(c for c in selected_columns if c not in column_name_map)
        if missing:
            raise ValueError(f'columns not defined in column name map: {", ".join(missing)}')
        self._selected_columns = tuple(selected_columns)
        self._column_name_map = dict(column_name_map)
        self._dtype = dtype
        self._indices = jnp.asarray(
            [self._column_name_map[name] for name in self._selected_columns], jnp.int32)
        self._clean()

    def _clean(self):
        self._output = jnp.asarray(0.0, dtype=jnp.float32)

    def _check_index(self, name, index, num_available):
        if index < 0 or index >= num_available:
            raise ValueError(
                f'column {name}({index}) is out of range; '
                f'only {num_available} columns in ndarrays')

    def cast(self, ndarrays):
        """ndarrays: a sequence of 1-D columns, or a pre-materialized (num_columns, N) table."""
        self._clean()
        if isinstance(ndarrays, (list, tuple)):
            # Minimum-HBM-traffic path: a single fused XLA stack+cast of only the
            # selected columns.  No kernel needed (the gather is trivial host-side).
            cols = []
            for name in self._selected_columns:
                index = self._column_name_map[name]
                self._check_index(name, index, len(ndarrays))
                cols.append(jnp.asarray(ndarrays[index]).astype(self._dtype))
            self._output = jnp.stack(cols, axis=-1)
        else:
            # Table already lives on device: gather only the selected rows in-kernel.
            table = jnp.asarray(ndarrays)  # (num_columns, N)
            for name in self._selected_columns:
                index = self._column_name_map[name]
                self._check_index(name, index, table.shape[0])
            self._output = cast_forward(table, self._indices, self._dtype)

    def forward(self, x):
        # Mirrors the PyTorch module: forward ignores x and returns the cached cast output.
        return self._output


if __name__ == "__main__":
    key = jax.random.PRNGKey(0)
    num_columns, n = 8, 1024
    # Raw int32 "ndarray" columns (simulating parsed minibatch columns).
    raw = jax.random.randint(key, (num_columns, n), minval=-100, maxval=100, dtype=jnp.int32)
    ndarrays = [raw[i] for i in range(num_columns)]

    column_name_map = {f"f{i}": i for i in range(num_columns)}
    selected_columns = ["f1", "f3", "f4", "f6"]

    # Pure-JAX reference of _do_cast semantics.
    ref = jnp.stack(
        [ndarrays[column_name_map[c]].astype(jnp.float32) for c in selected_columns], axis=-1)

    mod = CastPallas(selected_columns, column_name_map, dtype=jnp.float32)

    # Path 1: list of per-column ndarrays -> pure XLA stack+cast (no kernel).
    mod.cast(ndarrays)
    out_list = jax.block_until_ready(mod.forward(jnp.zeros((1,))))

    # Path 2: pre-materialized full table -> Pallas gather+cast kernel with
    # scalar-prefetch-driven index_map (DMAs only the selected columns).
    mod.cast(raw)
    out_table = jax.block_until_ready(mod.forward(jnp.zeros((1,))))

    for out in (out_list, out_table):
        assert out.shape == (n, len(selected_columns)), out.shape
        assert out.dtype == jnp.float32, out.dtype
        assert jnp.allclose(out, ref), "mismatch vs reference"

    # Ragged N (not a multiple of 128): exercised via the in-kernel path with padding.
    n2 = 1000
    raw2 = raw[:, :n2]
    ref2 = jnp.stack(
        [raw2[column_name_map[c]].astype(jnp.float32) for c in selected_columns], axis=-1)
    mod.cast(raw2)
    out_ragged = jax.block_until_ready(mod.forward(jnp.zeros((1,))))
    assert out_ragged.shape == (n2, len(selected_columns)), out_ragged.shape
    assert jnp.allclose(out_ragged, ref2), "mismatch vs ragged reference"

    print("KERNEL_OK")
</pallas_src>

<mosaic_0001>
module attributes {stable_mosaic.version = 11 : i64} {
  func.func @_gather_cast_kernel(%arg0: i32, %arg1: i32, %arg2: memref<4xi32, #tpu.memory_space<smem>>, %arg3: memref<1x8x128xi32, #tpu.memory_space<vmem>>, %arg4: memref<1x8x128xf32, #tpu.memory_space<vmem>>) attributes {dimension_semantics = [#tpu.dimension_semantics<parallel>, #tpu.dimension_semantics<parallel>], iteration_bounds = array<i64: 4, 1>, scalar_prefetch = 1 : i64, scratch_operands = 0 : i64, tpu.core_type = #tpu.core_type<tc>, window_params = [{transform_indices = @transform_0, window_bounds = array<i64: 1, 8, 128>}, {transform_indices = @transform_1, window_bounds = array<i64: 1, 8, 128>}]} {
    %c0 = arith.constant 0 : index
    %c0_0 = arith.constant 0 : index
    %c0_1 = arith.constant 0 : index
    %0 = vector.load %arg3[%c0, %c0_0, %c0_1] : memref<1x8x128xi32, #tpu.memory_space<vmem>>, vector<1x8x128xi32>
    %1 = arith.sitofp %0 : vector<1x8x128xi32> to vector<1x8x128xf32>
    %c0_2 = arith.constant 0 : index
    %c0_3 = arith.constant 0 : index
    %c0_4 = arith.constant 0 : index
    %2 = vector.load %arg4[%c0_2, %c0_3, %c0_4] : memref<1x8x128xf32, #tpu.memory_space<vmem>>, vector<1x8x128xf32>
    tpu.vector_store %arg4[%c0_2, %c0_3, %c0_4], %1 {strides = array<i32>} : memref<1x8x128xf32, #tpu.memory_space<vmem>>, vector<1x8x128xf32>,
    return
  }
  func.func @transform_0(%arg0: i32, %arg1: i32, %arg2: memref<4xi32, #tpu.memory_space<smem>>) -> (i32, i32, i32) {
    %0 = arith.index_cast %arg0 : i32 to index
    %1 = memref.load %arg2[%0] : memref<4xi32, #tpu.memory_space<smem>>
    %c0_i32 = arith.constant 0 : i32
    %c0_i32_0 = arith.constant 0 : i32
    return %1, %arg1, %c0_i32 : i32, i32, i32
  }
  func.func @transform_1(%arg0: i32, %arg1: i32, %arg2: memref<4xi32, #tpu.memory_space<smem>>) -> (i32, i32, i32) {
    %c0_i32 = arith.constant 0 : i32
    %c0_i32_0 = arith.constant 0 : i32
    return %arg0, %arg1, %c0_i32 : i32, i32, i32
  }
}

</mosaic_0001>

<llo_original>
// kernel: tpu_custom_call.1
$region0: #{tpu_custom_call.1}
  #allocation0 [shape = 'u32[]', space=smem, size = 0x4, offset = 0x4, fixed_abs, tag = 'smem constant byte address 0x4 - core index']
  #allocation1 [shape = 'u32[144,128]{1,0:T(1,128)}', space=vmem, size = 0x12000, scoped, tag = 'internal scratch']
  #allocation2 [shape = 's32[1]{0}', space=sflag, size = 0x4, scoped, tag = 'scoped memory for tpu_custom_call.1']
  #allocation3 [shape = 'u8[512]{0}', space=smem, size = 0x200, scoped, tag = 'prefetched SMEM operand 0']
  %s0 = inlined_call_operand.hbm [shape: s32[4], index: 0, kind: input, shape index: {}]
  %s1 = inlined_call_operand.hbm [shape: s32[8,8,128], index: 1, kind: input, shape index: {}]
  %s2 = inlined_call_operand.hbm [shape: f32[4,8,128], index: 2, kind: output, shape index: {}]
  %s3 = sld [smem:[#allocation0]]
  $region41: #{tpu_custom_call.1} parent=0
    _
  %s5 = ssub.s32 1, %s3
  %s6 = scalar_select 0, %s5, %s3
  %8 = dma.hbm_to_smem %s0, 16, [#allocation3], [#allocation2]
  %9 = dma.done [#allocation2], 16
  %10 = sfence
  $region1: #{tpu_custom_call.1} parent=0
    #allocation4 [shape = 'u8[8192]{0}', space=vmem, size = 0x2000, scoped, tag = 'input window, operand 1']
    #allocation5 [shape = 's32[2]{0}', space=sflag, size = 0x8, scoped, tag = 'scoped memory for tpu_custom_call.1']
    #allocation6 [shape = 's32[2]{0}', space=sflag, size = 0x8, scoped, tag = 'scoped memory for tpu_custom_call.1']
    #allocation7 [shape = 'u8[8192]{0}', space=vmem, size = 0x2000, scoped, tag = 'output window, operand 0']
    %11 = vsyncpa [#allocation5], 0
    %s12 = scalar_lea.sflag [#allocation5], 1
    %13 = vsyncpa %s12, 0
    %14 = vsyncpa [#allocation6], 0
    %s15 = scalar_lea.sflag [#allocation6], 1
    %16 = vsyncpa %s15, 0
    loop: start=0, step=1, limit=6
    $region2: #{tpu_custom_call.1} parent=1 // loop_pre_header
      _
    $region3: #{tpu_custom_call.1} parent=1 // loop_header
      %s18 = sphi 0, %s22
      %p19 = scmp.ge.s32.totalorder %s18, 6
      %s25 = sphi 0, %s37
      %s26 = sphi 0, %s33
      %s27 = sphi 0, %s25
      %s28 = sphi 0, %s26
      %s29 = sphi 0, %s27
      %s30 = sphi 0, %s28
      %s44 = sphi 0, %s46
      %s47 = sphi 0, %s44
      %s48 = sphi 0, %s47
      %s64 = sphi 0, %s48
      %s72 = sphi 0, %s74
      %s75 = sphi 0, %s72
      %s76 = sphi 0, %s75
      %s92 = sphi 0, %s76
    $region4: #{tpu_custom_call.1} parent=1 // loop_header_branch
      %21 = sbr.rel (%p19) target = $region8
    $region5: #{tpu_custom_call.1} parent=1 // loop_body
      %s23 = ssub.s32 %s18, 1
      %s24 = ssub.s32 %s18, 2
      %s31 = sadd.s32 1, %s26
      %p32 = scmp.ge.s32.totalorder %s31, 1
      %s33 = scalar_select %p32, 0, %s31
      %s34 = sadd.s32 1, %s25
      %s35 = scalar_select %p32, %s34, %s25
      %p36 = scmp.ge.s32.totalorder %s35, 4
      %s37 = scalar_select %p36, 0, %s35
      %s38 = sld [smem:[#allocation3 + %s25]]
      %s39 = sld [smem:[#allocation3 + %s37]]
      %s40 = ssub.s32 %s38, %s39
      %s41 = ssub.s32 %s26, %s33
      %s42 = sor.u32 %s40, %s41
      %p43 = scmp.eq.s32.totalorder %s42, 0
      %s45 = sadd.s32 %s44, 1
      %s46 = scalar_select %p43, %s44, %s45
      %p49 = pneg %p43
      %p50 = scmp.eq.s32.totalorder %s18, 3
      %p51 = por %p49, %p50
      %p52 = scmp.ne.s32.totalorder %s44, %s47
      %p53 = scmp.eq.s32.totalorder %s18, 0
      %p54 = por %p52, %p53
      %p55 = scmp.ne.s32.totalorder %s44, %s47
      %p56 = scmp.eq.s32.totalorder %s23, 3
      %p57 = por %p55, %p56
      %p58 = scmp.ne.s32.totalorder %s47, %s48
      %p59 = scmp.eq.s32.totalorder %s23, 0
      %p60 = por %p58, %p59
      %p61 = scmp.ne.s32.totalorder %s47, %s48
      %p62 = scmp.eq.s32.totalorder %s24, 3
      %p63 = por %p61, %p62
      %p65 = scmp.ne.s32.totalorder %s48, %s64
      %p66 = scmp.eq.s32.totalorder %s24, 0
      %p67 = por %p65, %p66
      %s68 = ssub.s32 %s25, %s37
      %s69 = ssub.s32 %s26, %s33
      %s70 = sor.u32 %s68, %s69
      %p71 = scmp.eq.s32.totalorder %s70, 0
      %s73 = sadd.s32 %s72, 1
      %s74 = scalar_select %p71, %s72, %s73
      %p77 = pneg %p71
      %p78 = scmp.eq.s32.totalorder %s18, 3
      %p79 = por %p77, %p78
      %p80 = scmp.ne.s32.totalorder %s72, %s75
      %p81 = scmp.eq.s32.totalorder %s18, 0
      %p82 = por %p80, %p81
      %p83 = scmp.ne.s32.totalorder %s72, %s75
      %p84 = scmp.eq.s32.totalorder %s23, 3
      %p85 = por %p83, %p84
      %p86 = scmp.ne.s32.totalorder %s75, %s76
      %p87 = scmp.eq.s32.totalorder %s23, 0
      %p88 = por %p86, %p87
      %p89 = scmp.ne.s32.totalorder %s75, %s76
      %p90 = scmp.eq.s32.totalorder %s24, 3
      %p91 = por %p89, %p90
      %p93 = scmp.ne.s32.totalorder %s76, %s92
      %p94 = scmp.eq.s32.totalorder %s24, 0
      %p95 = por %p93, %p94
      %p96 = scmp.le.s32.totalorder 1, %s18
      %p97 = scmp.lt.s32.totalorder %s18, 5
      %p98 = pnand %p96, %p97
      %p99 = pneg %p98
      // Predicated region
      $region9: #{tpu_custom_call.1} parent=5 // pred_check
        _
      $region10: #{tpu_custom_call.1} parent=5 // pred_check_branch
        %101 = sbr.rel (%p98) target = $region12
      $region11: #{tpu_custom_call.1} parent=5 // pred_region
        %s102 = ssub.s32 %s18, 1
      $region12: #{tpu_custom_call.1} parent=5 // pred_fallthru
        _
      %p103 = scmp.lt.s32.totalorder %s18, 4
      // Predicated region
      $region13: #{tpu_custom_call.1} parent=5 // pred_check
        %p104 = pneg %p103
      $region14: #{tpu_custom_call.1} parent=5 // pred_check_branch
        %106 = sbr.rel (%p104) target = $region16
      $region15: #{tpu_custom_call.1} parent=5 // pred_region
        // Predicated region
        $region17: #{tpu_custom_call.1} parent=15 // pred_check
          %p107 = pneg %p54
        $region18: #{tpu_custom_call.1} parent=15 // pred_check_branch
          %109 = sbr.rel (%p107) target = $region20
        $region19: #{tpu_custom_call.1} parent=15 // pred_region
          %s110 = sand.u32 %s44, 1
          %s111 = scalar_lea.sflag [#allocation5], %s110
          %s112 = sand.u32 %s44, 1
          %s113 = smul.addr %s112, 8
          %s114 = scalar_lea.vmem [#allocation4], %s113
          %s115 = sld [smem:[#allocation3 + %s25]]
          %s117 = ssub.s32 128, 128
          %118 = vsyncadd %s111, %s117
          %s119 = sadd.s32 %s26, %s115
          %s120 = smul.addr %s119, 128
          %s121 = scalar_lea.hbm %s1, %s120
          %s123 = sshll.u32 %s114, 4
          %s124 = int_to_ptr.vmem [resolvable:$true] %s123
          %126 = dma.hbm_to_vmem [thread:$0]  %s121, 128, %s124, %s111
        $region20: #{tpu_custom_call.1} parent=15 // pred_fallthru
          _
      $region16: #{tpu_custom_call.1} parent=5 // pred_fallthru
        _
      %p127 = scmp.le.s32.totalorder 1, %s18
      %p128 = scmp.lt.s32.totalorder %s18, 5
      %p129 = pnand %p127, %p128
      %p130 = pneg %p129
      // Predicated region
      $region21: #{tpu_custom_call.1} parent=5 // pred_check
        _
      $region22: #{tpu_custom_call.1} parent=5 // pred_check_branch
        %132 = sbr.rel (%p129) target = $region24
      $region23: #{tpu_custom_call.1} parent=5 // pred_region
        %s133 = ssub.s32 %s18, 1
        %s134 = sand.u32 %s47, 1
        %s135 = scalar_lea.sflag [#allocation5], %s134
        %s136 = sand.u32 %s47, 1
        %s137 = smul.addr %s136, 8
        %s138 = scalar_lea.vmem [#allocation4], %s137
        // Predicated region
        $region25: #{tpu_custom_call.1} parent=23 // pred_check
          %p139 = pneg %p60
        $region26: #{tpu_custom_call.1} parent=23 // pred_check_branch
          %141 = sbr.rel (%p139) target = $region28
        $region27: #{tpu_custom_call.1} parent=23 // pred_region
          %142 = dma.done %s135, 128
        $region28: #{tpu_custom_call.1} parent=23 // pred_fallthru
          _
        %s143 = sand.u32 %s47, 1
        %s144 = scalar_lea.sflag [#allocation5], %s143
        %s145 = sand.u32 %s47, 1
        %s146 = smul.addr %s145, 8
        %s147 = scalar_lea.vmem [#allocation4], %s146
        %p148 = pneg %p60
        %p149 = pneg %p57
        %p150 = pneg %p88
        %p151 = pneg %p85
        %s152 = sand.u32 %s75, 1
        %s153 = scalar_lea.sflag [#allocation6], %s152
        %s154 = sand.u32 %s75, 1
        %s155 = smul.addr %s154, 8
        %s156 = scalar_lea.vmem [#allocation7], %s155
        %s157 = sld [smem:[#allocation3 + %s27]]
        %v158 = vld [vmem:[%s138] sm:$0xff]
        %v159 = vcvt.s32.f32 %v158
        %160 = vst [vmem:[%s156] sm:$0xff] %v159
        %s161 = sand.u32 %s75, 1
        %s162 = scalar_lea.sflag [#allocation6], %s161
        %s163 = sand.u32 %s75, 1
        %s164 = smul.addr %s163, 8
        %s165 = scalar_lea.vmem [#allocation7], %s164
        // Predicated region
        $region29: #{tpu_custom_call.1} parent=23 // pred_check
          %p166 = pneg %p85
        $region30: #{tpu_custom_call.1} parent=23 // pred_check_branch
          %168 = sbr.rel (%p166) target = $region32
        $region31: #{tpu_custom_call.1} parent=23 // pred_region
          %s170 = ssub.s32 128, 128
          %171 = vsyncadd %s162, %s170
          %s172 = sadd.s32 %s28, %s27
          %s173 = smul.addr %s172, 128
          %s174 = scalar_lea.hbm %s2, %s173
          %s176 = sshll.u32 %s165, 4
          %s177 = int_to_ptr.vmem [resolvable:$true] %s176
          %179 = dma.vmem_to_hbm [thread:$0]  %s177, 128, %s174, %s162
        $region32: #{tpu_custom_call.1} parent=23 // pred_fallthru
          _
      $region24: #{tpu_custom_call.1} parent=5 // pred_fallthru
        _
      %p180 = scmp.le.s32.totalorder 2, %s18
      // Predicated region
      $region33: #{tpu_custom_call.1} parent=5 // pred_check
        %p181 = pneg %p180
      $region34: #{tpu_custom_call.1} parent=5 // pred_check_branch
        %183 = sbr.rel (%p181) target = $region36
      $region35: #{tpu_custom_call.1} parent=5 // pred_region
        %s184 = ssub.s32 %s18, 2
        // Predicated region
        $region37: #{tpu_custom_call.1} parent=35 // pred_check
          %p185 = pneg %p91
        $region38: #{tpu_custom_call.1} parent=35 // pred_check_branch
          %187 = sbr.rel (%p185) target = $region40
        $region39: #{tpu_custom_call.1} parent=35 // pred_region
          %s188 = sand.u32 %s76, 1
          %s189 = scalar_lea.sflag [#allocation6], %s188
          %s190 = sand.u32 %s76, 1
          %s191 = smul.addr %s190, 8
          %s192 = scalar_lea.vmem [#allocation7], %s191
          %193 = dma.done %s189, 128
        $region40: #{tpu_custom_call.1} parent=35 // pred_fallthru
          _
      $region36: #{tpu_custom_call.1} parent=5 // pred_fallthru
        _
    $region6: #{tpu_custom_call.1} parent=1 // loop_footer
      %s22 = sadd.s32 1, %s18
    $region7: #{tpu_custom_call.1} parent=1 // loop_footer_branch
      %17 = sbr.rel target = $region3
    $region8: #{tpu_custom_call.1} parent=1 // loop_exit
      _
    %194 = vsyncpa [#allocation5], 1
    %s195 = scalar_lea.sflag [#allocation5], 1
    %196 = vsyncpa %s195, 1
    %197 = vsyncpa [#allocation6], 1
    %s198 = scalar_lea.sflag [#allocation6], 1
    %199 = vsyncpa %s198, 1

</llo_original>
